<compile_context>
chip_gen: v6e
topology: v6e:2x2x1
jax: 0.10.0
libtpu: 0.0.40
codegen_flags: <defaults>
</compile_context>

<pallas_src>
import functools

import jax
import jax.numpy as jnp
from jax.experimental import pallas as pl
from jax.experimental.pallas import tpu as pltpu

NEG_SLOPE = 0.2          # GATConv default negative_slope
NEG_INF = -1e30          # bf16-representable mask value


def _round_up(x, m):
    return (x + m - 1) // m * m


# ----------------------------------------------------------------------------
# Pallas kernel: online-softmax GAT attention over src tiles + fused projection
# ----------------------------------------------------------------------------
def _gat_kernel(xp_ref, a_src_ref, a_dst_ref, ae_ref, w_proj_ref, const_ref,
                o_ref, m_sc, l_sc, acc_sc, *, heads, dim_out):
    """
    Grid: (n_dst_tiles [parallel], n_src_tiles [arbitrary / reduction]).

    xp_ref:     (Ts, H*C)   bf16  projected src-node features (precomputed)
    a_src_ref:  (H, Ts)     f32   per-head src attention scores (precomputed)
    a_dst_ref:  (Td, H)     f32   per-head dst attention scores (precomputed)
    ae_ref:     (H, Td, Ts) bf16  dense edge logits, NEG_INF on non-edges
    w_proj_ref: (H*C, Cout) f32   output projection (W_proj^T)
    const_ref:  (1, Cout)   f32   GATConv bias folded through proj + proj bias
    o_ref:      (Td, Cout)
    scratch:    m_sc/l_sc (Td, H) f32, acc_sc (Td, H*C) f32 (online-softmax state)
    """
    H, C = heads, dim_out
    j = pl.program_id(1)

    @pl.when(j == 0)
    def _():
        m_sc[...] = jnp.full_like(m_sc, -jnp.inf)
        l_sc[...] = jnp.zeros_like(l_sc)
        acc_sc[...] = jnp.zeros_like(acc_sc)

    a_dst = a_dst_ref[...]                               # (Td, H)
    a_src = a_src_ref[...]                               # (H, Ts)
    xp = xp_ref[...]                                     # (Ts, H*C) bf16

    for h in range(H):                                   # static unroll over heads
        # logits in f32; NEG_INF pre-fill self-masks non-edges through the exp
        logits = (ae_ref[h].astype(jnp.float32)
                  + a_dst[:, h:h + 1] + a_src[h:h + 1, :])            # (Td, Ts)
        logits = jnp.maximum(logits, NEG_SLOPE * logits)              # leaky relu
        m_old = m_sc[:, h:h + 1]
        m_new = jnp.maximum(m_old, jnp.max(logits, axis=-1, keepdims=True))
        corr = jnp.exp(m_old - m_new)
        p = jnp.exp(logits - m_new)                                   # 0 on non-edges
        l_sc[:, h:h + 1] = corr * l_sc[:, h:h + 1] + jnp.sum(p, -1, keepdims=True)
        acc_sc[:, h * C:(h + 1) * C] = (
            corr * acc_sc[:, h * C:(h + 1) * C]
            + jnp.dot(p.astype(jnp.bfloat16), xp[:, h * C:(h + 1) * C],
                      preferred_element_type=jnp.float32))            # bf16 MXU
        m_sc[:, h:h + 1] = m_new

    @pl.when(j == pl.num_programs(1) - 1)
    def _():
        # exact normalisation (no approx reciprocal), heads packed in acc_sc
        for h in range(H):
            acc_sc[:, h * C:(h + 1) * C] = (acc_sc[:, h * C:(h + 1) * C]
                                            / l_sc[:, h:h + 1])
        o_ref[...] = (jnp.dot(acc_sc[...], w_proj_ref[...],
                              preferred_element_type=jnp.float32)
                      + const_ref[...])


# ----------------------------------------------------------------------------
# Glue
# ----------------------------------------------------------------------------
def add_self_loops_mean(edge_index, edge_attr, num_nodes):
    """PyG GATConv: remove_self_loops (no-op here) + add_self_loops(fill_value='mean')."""
    src, dst = edge_index[0], edge_index[1]
    ones = jnp.ones(src.shape, jnp.float32)
    deg = jax.ops.segment_sum(ones, dst, num_segments=num_nodes)
    ssum = jax.ops.segment_sum(edge_attr, dst, num_segments=num_nodes)
    loop_attr = ssum / jnp.maximum(deg, 1.0)[:, None]
    loop = jnp.arange(num_nodes, dtype=src.dtype)
    return (jnp.concatenate([src, loop]),
            jnp.concatenate([dst, loop]),
            jnp.concatenate([edge_attr, loop_attr], axis=0))


def _vmem_capacity_bytes():
    try:
        return int(getattr(pltpu.get_tpu_info(), "vmem_capacity_bytes", 128 << 20))
    except Exception:
        return 128 << 20


def _choose_tiling(num_nodes):
    """Generation-aware tile selection (dst tile, src tile, padded N)."""
    vmem_cap = _vmem_capacity_bytes()
    small_vmem = vmem_cap <= (64 << 20)             # v7x-class TC
    n16 = _round_up(max(num_nodes, 16), 16)
    if n16 <= 512:
        # single src tile; >=2 dst tiles so a v7x megacore can split rows
        tile_dst = _round_up((n16 + 1) // 2, 16)
        n_pad = 2 * tile_dst
        tile_src = n_pad
    else:
        # bounded blocks on v7x; larger tiles on v5e/v6e (128 MiB VMEM)
        tile_dst, tile_src = (128, 512) if small_vmem else (256, 1024)
        n_pad = _round_up(num_nodes, tile_src)       # tile_src % tile_dst == 0
    return n_pad, tile_dst, tile_src, vmem_cap


def gate_conv_forward(x, edge_index, edge_attr, params, *, heads, dim_out):
    N, Fin = x.shape
    H, C = heads, dim_out

    # --- XLA glue: self loops + folded edge-attention term -------------------
    src_aug, dst_aug, ea_aug = add_self_loops_mean(edge_index, edge_attr, N)

    # edge features only affect the attention logit: fold lin_edge & att_edge
    w_edge_h = params['w_edge'].reshape(H, C, -1)                     # (H, C, edge_dim)
    w_ae = jnp.einsum('hcd,hc->dh', w_edge_h, params['att_edge'])     # (edge_dim, H)
    alpha_edge = ea_aug @ w_ae                                        # (E_aug, H)

    n_pad, tile_dst, tile_src, vmem_cap = _choose_tiling(N)
    n_dst, n_src = n_pad // tile_dst, n_pad // tile_src

    # --- grid-invariant work hoisted out of the kernel (fuses with glue) -----
    x_p = jnp.zeros((n_pad, Fin), jnp.float32).at[:N].set(x)
    xp = x_p @ params['w_src'].T                                      # (n_pad, H*C) f32
    xp_h = xp.reshape(n_pad, H, C)
    a_src = (xp_h * params['att_src'][None]).sum(-1).T                # (H, n_pad) f32
    a_dst = (xp_h * params['att_dst'][None]).sum(-1)                  # (n_pad, H) f32
    xp_bf = xp.astype(jnp.bfloat16)                                   # message operand

    # dense edge logits in bf16; NEG_INF pre-fill => softmax self-masks non-edges
    ae_dense = jnp.full((H, n_pad, n_pad), NEG_INF, jnp.bfloat16)
    ae_dense = ae_dense.at[:, dst_aug, src_aug].set(
        alpha_edge.T.astype(jnp.bfloat16))

    # GATConv bias folded through the (linear) projection
    w_proj_packed = params['w_proj'].T                                # (H*C, Cout)
    const = (params['bias'][None, :] @ w_proj_packed
             + params['b_proj'][None, :])                             # (1, Cout)

    kernel = functools.partial(_gat_kernel, heads=H, dim_out=C)

    # generation-aware VMEM budget: double-buffered blocks + scratch + headroom,
    # capped at ~70% of physical VMEM (compiler-scratch headroom on v7x)
    blk_bytes = (tile_src * H * C * 2            # xp (bf16)
                 + H * tile_src * 4              # a_src
                 + tile_dst * H * 4              # a_dst
                 + H * tile_dst * tile_src * 2   # ae (bf16)
                 + H * C * C * 4 + C * 4         # w_proj + const
                 + tile_dst * C * 4)             # out
    scratch_bytes = tile_dst * (2 * H + H * C) * 4
    vmem_limit = int(min(max(2 * blk_bytes + scratch_bytes + (8 << 20), 16 << 20),
                         int(0.7 * vmem_cap)))

    out = pl.pallas_call(
        kernel,
        out_shape=jax.ShapeDtypeStruct((n_pad, C), jnp.float32),
        grid=(n_dst, n_src),
        in_specs=[
            pl.BlockSpec((tile_src, H * C), lambda i, j: (j, 0)),            # xp
            pl.BlockSpec((H, tile_src), lambda i, j: (0, j)),                # a_src
            pl.BlockSpec((tile_dst, H), lambda i, j: (i, 0)),                # a_dst
            pl.BlockSpec((H, tile_dst, tile_src), lambda i, j: (0, i, j)),   # ae
            pl.BlockSpec((H * C, C), lambda i, j: (0, 0)),                   # w_proj^T
            pl.BlockSpec((1, C), lambda i, j: (0, 0)),                       # folded bias
        ],
        out_specs=pl.BlockSpec((tile_dst, C), lambda i, j: (i, 0)),
        scratch_shapes=[
            pltpu.VMEM((tile_dst, H), jnp.float32),       # running max
            pltpu.VMEM((tile_dst, H), jnp.float32),       # running sum
            pltpu.VMEM((tile_dst, H * C), jnp.float32),   # running weighted sum
        ],
        compiler_params=pltpu.CompilerParams(
            dimension_semantics=("parallel", "arbitrary"),
            vmem_limit_bytes=vmem_limit),
    )(xp_bf, a_src, a_dst, ae_dense, w_proj_packed, const)
    return out[:N]


# ----------------------------------------------------------------------------
# Pure-JAX reference (segment softmax), used only for verification
# ----------------------------------------------------------------------------
def reference(x, edge_index, edge_attr, params, *, heads, dim_out):
    N, _ = x.shape
    H, C = heads, dim_out
    src, dst, ea = add_self_loops_mean(edge_index, edge_attr, N)
    xp = (x @ params['w_src'].T).reshape(N, H, C)
    a_src = (xp * params['att_src'].reshape(1, H, C)).sum(-1)
    a_dst = (xp * params['att_dst'].reshape(1, H, C)).sum(-1)
    ep = (ea @ params['w_edge'].T).reshape(-1, H, C)
    a_edge = (ep * params['att_edge'].reshape(1, H, C)).sum(-1)
    alpha = a_src[src] + a_dst[dst] + a_edge
    alpha = jnp.where(alpha > 0, alpha, NEG_SLOPE * alpha)
    amax = jax.ops.segment_max(alpha, dst, num_segments=N)
    alpha = jnp.exp(alpha - amax[dst])
    denom = jax.ops.segment_sum(alpha, dst, num_segments=N)
    alpha = alpha / denom[dst]
    msg = xp[src] * alpha[..., None]
    out = jax.ops.segment_sum(msg, dst, num_segments=N).reshape(N, H * C)
    out = out + params['bias']
    return out @ params['w_proj'].T + params['b_proj']


# ----------------------------------------------------------------------------
if __name__ == "__main__":
    # small config consistent with the module: dim_in=8, dim_out=8, heads=2,
    # edge_dim=4, att_concat_proj=True, bias=True; graph: N=16 nodes, 48 edges.
    N, FIN, C, H, EDGE_DIM = 16, 8, 8, 2, 4

    key = jax.random.PRNGKey(0)
    ks = jax.random.split(key, 10)

    def init(k, shape, scale=0.1):
        return (scale * jax.random.normal(k, shape)).astype(jnp.float32)

    params = {
        'w_src':    init(ks[0], (H * C, FIN)),       # GATConv.lin weight
        'att_src':  init(ks[1], (H, C)),
        'att_dst':  init(ks[2], (H, C)),
        'att_edge': init(ks[3], (H, C)),
        'w_edge':   init(ks[4], (H * C, EDGE_DIM)),  # GATConv.lin_edge weight
        'bias':     init(ks[5], (H * C,)),           # GATConv bias (concat=True)
        'w_proj':   init(ks[6], (C, H * C)),         # self.proj weight
        'b_proj':   init(ks[7], (C,)),               # self.proj bias
    }

    x = jax.random.normal(ks[8], (N, FIN), dtype=jnp.float32)
    # deterministic distinct edges, no pre-existing self loops: (i+k) % N -> i, k=1..3
    dst = jnp.repeat(jnp.arange(N, dtype=jnp.int32), 3)
    off = jnp.tile(jnp.arange(1, 4, dtype=jnp.int32), N)
    src = (dst + off) % N
    edge_index = jnp.stack([src, dst])                        # (2, 48)
    edge_attr = jax.random.normal(ks[9], (src.shape[0], EDGE_DIM), dtype=jnp.float32)

    out = gate_conv_forward(x, edge_index, edge_attr, params, heads=H, dim_out=C)
    out = jax.block_until_ready(out)

    ref = reference(x, edge_index, edge_attr, params, heads=H, dim_out=C)
    assert out.shape == (N, C) and out.dtype == jnp.float32
    # tolerance covers bf16 storage of ae / xp and bf16 attention-message matmul
    # (accumulation and softmax normalisation remain f32 / exact).
    assert jnp.allclose(out, ref, atol=5e-3, rtol=2e-2), (
        f"mismatch: max abs err {float(jnp.max(jnp.abs(out - ref)))}")

    print("KERNEL_OK")
</pallas_src>

<mosaic_0001>
module attributes {stable_mosaic.version = 11 : i64} {
  func.func @_gat_kernel(%arg0: i32, %arg1: i32, %arg2: memref<32x16xbf16, #tpu.memory_space<vmem>>, %arg3: memref<2x32xf32, #tpu.memory_space<vmem>>, %arg4: memref<16x2xf32, #tpu.memory_space<vmem>>, %arg5: memref<2x16x32xbf16, #tpu.memory_space<vmem>>, %arg6: memref<16x8xf32, #tpu.memory_space<vmem>>, %arg7: memref<1x8xf32, #tpu.memory_space<vmem>>, %arg8: memref<16x8xf32, #tpu.memory_space<vmem>>, %arg9: memref<16x2xf32, #tpu.memory_space<vmem>>, %arg10: memref<16x2xf32, #tpu.memory_space<vmem>>, %arg11: memref<16x16xf32, #tpu.memory_space<vmem>>) attributes {dimension_semantics = [#tpu.dimension_semantics<parallel>, #tpu.dimension_semantics<arbitrary>], iteration_bounds = array<i64: 2, 1>, scalar_prefetch = 0 : i64, scratch_operands = 3 : i64, tpu.core_type = #tpu.core_type<tc>, window_params = [{transform_indices = @transform_0, window_bounds = array<i64: 32, 16>}, {transform_indices = @transform_1, window_bounds = array<i64: 2, 32>}, {transform_indices = @transform_2, window_bounds = array<i64: 16, 2>}, {transform_indices = @transform_3, window_bounds = array<i64: 2, 16, 32>}, {pipeline_mode = #tpu.pipeline_mode<synchronous>, transform_indices = @transform_4, window_bounds = array<i64: 16, 8>}, {pipeline_mode = #tpu.pipeline_mode<synchronous>, transform_indices = @transform_5, window_bounds = array<i64: 1, 8>}, {transform_indices = @transform_6, window_bounds = array<i64: 16, 8>}]} {
    %c0_i32 = arith.constant 0 : i32
    %0 = arith.cmpi eq, %arg1, %c0_i32 : i32
    %1 = arith.extui %0 : i1 to i32
    %c0_i32_0 = arith.constant 0 : i32
    %2 = arith.cmpi ne, %1, %c0_i32_0 : i32
    scf.if %2 {
      %cst_43 = arith.constant 0xFF800000 : f32
      %81 = vector.broadcast %cst_43 : f32 to vector<16x2xf32>
      %c0_44 = arith.constant 0 : index
      %c0_45 = arith.constant 0 : index
      %82 = vector.load %arg9[%c0_44, %c0_45] : memref<16x2xf32, #tpu.memory_space<vmem>>, vector<16x2xf32>
      tpu.vector_store %arg9[%c0_44, %c0_45], %81 {strides = array<i32>} : memref<16x2xf32, #tpu.memory_space<vmem>>, vector<16x2xf32>,
      %cst_46 = arith.constant 0.000000e+00 : f32
      %83 = vector.broadcast %cst_46 : f32 to vector<16x2xf32>
      %c0_47 = arith.constant 0 : index
      %c0_48 = arith.constant 0 : index
      %84 = vector.load %arg10[%c0_47, %c0_48] : memref<16x2xf32, #tpu.memory_space<vmem>>, vector<16x2xf32>
      tpu.vector_store %arg10[%c0_47, %c0_48], %83 {strides = array<i32>} : memref<16x2xf32, #tpu.memory_space<vmem>>, vector<16x2xf32>,
      %cst_49 = arith.constant 0.000000e+00 : f32
      %85 = vector.broadcast %cst_49 : f32 to vector<16x16xf32>
      %c0_50 = arith.constant 0 : index
      %c0_51 = arith.constant 0 : index
      %86 = vector.load %arg11[%c0_50, %c0_51] : memref<16x16xf32, #tpu.memory_space<vmem>>, vector<16x16xf32>
      tpu.vector_store %arg11[%c0_50, %c0_51], %85 {strides = array<i32>} : memref<16x16xf32, #tpu.memory_space<vmem>>, vector<16x16xf32>,
    } else {
    }
    %c0 = arith.constant 0 : index
    %c0_1 = arith.constant 0 : index
    %3 = vector.load %arg4[%c0, %c0_1] : memref<16x2xf32, #tpu.memory_space<vmem>>, vector<16x2xf32>
    %c0_2 = arith.constant 0 : index
    %c0_3 = arith.constant 0 : index
    %4 = vector.load %arg3[%c0_2, %c0_3] : memref<2x32xf32, #tpu.memory_space<vmem>>, vector<2x32xf32>
    %c0_4 = arith.constant 0 : index
    %c0_5 = arith.constant 0 : index
    %5 = vector.load %arg2[%c0_4, %c0_5] : memref<32x16xbf16, #tpu.memory_space<vmem>>, vector<32x16xbf16>
    %c0_6 = arith.constant 0 : index
    %c0_7 = arith.constant 0 : index
    %c0_8 = arith.constant 0 : index
    %6 = vector.load %arg5[%c0_6, %c0_7, %c0_8] : memref<2x16x32xbf16, #tpu.memory_space<vmem>>, vector<1x16x32xbf16>
    %7 = vector.shape_cast %6 : vector<1x16x32xbf16> to vector<16x32xbf16>
    %8 = arith.extf %7 : vector<16x32xbf16> to vector<16x32xf32>
    %9 = vector.extract_strided_slice %3 {offsets = [0, 0], sizes = [16, 1], strides = [1, 1]} : vector<16x2xf32> to vector<16x1xf32>
    %10 = vector.broadcast %9 : vector<16x1xf32> to vector<16x32xf32>
    %11 = arith.addf %8, %10 : vector<16x32xf32>
    %12 = vector.extract_strided_slice %4 {offsets = [0, 0], sizes = [1, 32], strides = [1, 1]} : vector<2x32xf32> to vector<1x32xf32>
    %13 = vector.broadcast %12 : vector<1x32xf32> to vector<16x32xf32>
    %14 = arith.addf %11, %13 : vector<16x32xf32>
    %cst = arith.constant 2.000000e-01 : f32
    %15 = vector.broadcast %cst : f32 to vector<16x32xf32>
    %16 = arith.mulf %15, %14 : vector<16x32xf32>
    %17 = arith.maximumf %14, %16 : vector<16x32xf32>
    %c0_9 = arith.constant 0 : index
    %c0_10 = arith.constant 0 : index
    %18 = vector.load %arg9[%c0_9, %c0_10] : memref<16x2xf32, #tpu.memory_space<vmem>>, vector<16x1xf32>
    %cst_11 = arith.constant dense<0xFF800000> : vector<16xf32>
    %19 = vector.multi_reduction <maximumf>, %17, %cst_11 [1] : vector<16x32xf32> to vector<16xf32>
    %20 = vector.shape_cast %19 : vector<16xf32> to vector<16x1xf32>
    %21 = arith.maximumf %18, %20 : vector<16x1xf32>
    %22 = arith.subf %18, %21 : vector<16x1xf32>
    %23 = math.exp %22 : vector<16x1xf32>
    %24 = vector.broadcast %21 : vector<16x1xf32> to vector<16x32xf32>
    %25 = arith.subf %17, %24 : vector<16x32xf32>
    %26 = math.exp %25 : vector<16x32xf32>
    %c0_12 = arith.constant 0 : index
    %c0_13 = arith.constant 0 : index
    %27 = vector.load %arg10[%c0_12, %c0_13] : memref<16x2xf32, #tpu.memory_space<vmem>>, vector<16x1xf32>
    %28 = arith.mulf %23, %27 : vector<16x1xf32>
    %cst_14 = arith.constant dense<0.000000e+00> : vector<16xf32>
    %29 = vector.multi_reduction <add>, %26, %cst_14 [1] : vector<16x32xf32> to vector<16xf32>
    %30 = vector.shape_cast %29 : vector<16xf32> to vector<16x1xf32>
    %31 = arith.addf %28, %30 : vector<16x1xf32>
    %c0_15 = arith.constant 0 : index
    %c0_16 = arith.constant 0 : index
    %32 = vector.load %arg10[%c0_15, %c0_16] : memref<16x2xf32, #tpu.memory_space<vmem>>, vector<16x1xf32>
    tpu.vector_store %arg10[%c0_15, %c0_16], %31 {strides = array<i32>} : memref<16x2xf32, #tpu.memory_space<vmem>>, vector<16x1xf32>,
    %c0_17 = arith.constant 0 : index
    %c0_18 = arith.constant 0 : index
    %33 = vector.load %arg11[%c0_17, %c0_18] : memref<16x16xf32, #tpu.memory_space<vmem>>, vector<16x8xf32>
    %34 = vector.broadcast %23 : vector<16x1xf32> to vector<16x8xf32>
    %35 = arith.mulf %34, %33 : vector<16x8xf32>
    %36 = arith.truncf %26 : vector<16x32xf32> to vector<16x32xbf16>
    %37 = vector.extract_strided_slice %5 {offsets = [0, 0], sizes = [32, 8], strides = [1, 1]} : vector<32x16xbf16> to vector<32x8xbf16>
    %cst_19 = arith.constant dense<0.000000e+00> : vector<16x8xf32>
    %38 = tpu.matmul %36, %37, %cst_19 {dimension_numbers = #tpu.dot_dimension_numbers<[1], [0], [0], [1], [0, 0, 1, 1], [], []>} : vector<16x32xbf16>, vector<32x8xbf16>, vector<16x8xf32> -> vector<16x8xf32>
    %39 = arith.addf %35, %38 : vector<16x8xf32>
    %c0_20 = arith.constant 0 : index
    %c0_21 = arith.constant 0 : index
    %40 = vector.load %arg11[%c0_20, %c0_21] : memref<16x16xf32, #tpu.memory_space<vmem>>, vector<16x8xf32>
    tpu.vector_store %arg11[%c0_20, %c0_21], %39 {strides = array<i32>} : memref<16x16xf32, #tpu.memory_space<vmem>>, vector<16x8xf32>,
    %c0_22 = arith.constant 0 : index
    %c0_23 = arith.constant 0 : index
    %41 = vector.load %arg9[%c0_22, %c0_23] : memref<16x2xf32, #tpu.memory_space<vmem>>, vector<16x1xf32>
    tpu.vector_store %arg9[%c0_22, %c0_23], %21 {strides = array<i32>} : memref<16x2xf32, #tpu.memory_space<vmem>>, vector<16x1xf32>,
    %c1 = arith.constant 1 : index
    %c0_24 = arith.constant 0 : index
    %c0_25 = arith.constant 0 : index
    %42 = vector.load %arg5[%c1, %c0_24, %c0_25] : memref<2x16x32xbf16, #tpu.memory_space<vmem>>, vector<1x16x32xbf16>
    %43 = vector.shape_cast %42 : vector<1x16x32xbf16> to vector<16x32xbf16>
    %44 = arith.extf %43 : vector<16x32xbf16> to vector<16x32xf32>
    %45 = vector.extract_strided_slice %3 {offsets = [0, 1], sizes = [16, 1], strides = [1, 1]} : vector<16x2xf32> to vector<16x1xf32>
    %46 = vector.broadcast %45 : vector<16x1xf32> to vector<16x32xf32>
    %47 = arith.addf %44, %46 : vector<16x32xf32>
    %48 = vector.extract_strided_slice %4 {offsets = [1, 0], sizes = [1, 32], strides = [1, 1]} : vector<2x32xf32> to vector<1x32xf32>
    %49 = vector.broadcast %48 : vector<1x32xf32> to vector<16x32xf32>
    %50 = arith.addf %47, %49 : vector<16x32xf32>
    %cst_26 = arith.constant 2.000000e-01 : f32
    %51 = vector.broadcast %cst_26 : f32 to vector<16x32xf32>
    %52 = arith.mulf %51, %50 : vector<16x32xf32>
    %53 = arith.maximumf %50, %52 : vector<16x32xf32>
    %c0_27 = arith.constant 0 : index
    %c1_28 = arith.constant 1 : index
    %54 = vector.load %arg9[%c0_27, %c1_28] : memref<16x2xf32, #tpu.memory_space<vmem>>, vector<16x1xf32>
    %cst_29 = arith.constant dense<0xFF800000> : vector<16xf32>
    %55 = vector.multi_reduction <maximumf>, %53, %cst_29 [1] : vector<16x32xf32> to vector<16xf32>
    %56 = vector.shape_cast %55 : vector<16xf32> to vector<16x1xf32>
    %57 = arith.maximumf %54, %56 : vector<16x1xf32>
    %58 = arith.subf %54, %57 : vector<16x1xf32>
    %59 = math.exp %58 : vector<16x1xf32>
    %60 = vector.broadcast %57 : vector<16x1xf32> to vector<16x32xf32>
    %61 = arith.subf %53, %60 : vector<16x32xf32>
    %62 = math.exp %61 : vector<16x32xf32>
    %c0_30 = arith.constant 0 : index
    %c1_31 = arith.constant 1 : index
    %63 = vector.load %arg10[%c0_30, %c1_31] : memref<16x2xf32, #tpu.memory_space<vmem>>, vector<16x1xf32>
    %64 = arith.mulf %59, %63 : vector<16x1xf32>
    %cst_32 = arith.constant dense<0.000000e+00> : vector<16xf32>
    %65 = vector.multi_reduction <add>, %62, %cst_32 [1] : vector<16x32xf32> to vector<16xf32>
    %66 = vector.shape_cast %65 : vector<16xf32> to vector<16x1xf32>
    %67 = arith.addf %64, %66 : vector<16x1xf32>
    %c0_33 = arith.constant 0 : index
    %c1_34 = arith.constant 1 : index
    %68 = vector.load %arg10[%c0_33, %c1_34] : memref<16x2xf32, #tpu.memory_space<vmem>>, vector<16x1xf32>
    tpu.vector_store %arg10[%c0_33, %c1_34], %67 {strides = array<i32>} : memref<16x2xf32, #tpu.memory_space<vmem>>, vector<16x1xf32>,
    %c0_35 = arith.constant 0 : index
    %c8 = arith.constant 8 : index
    %69 = vector.load %arg11[%c0_35, %c8] : memref<16x16xf32, #tpu.memory_space<vmem>>, vector<16x8xf32>
    %70 = vector.broadcast %59 : vector<16x1xf32> to vector<16x8xf32>
    %71 = arith.mulf %70, %69 : vector<16x8xf32>
    %72 = arith.truncf %62 : vector<16x32xf32> to vector<16x32xbf16>
    %73 = vector.extract_strided_slice %5 {offsets = [0, 8], sizes = [32, 8], strides = [1, 1]} : vector<32x16xbf16> to vector<32x8xbf16>
    %cst_36 = arith.constant dense<0.000000e+00> : vector<16x8xf32>
    %74 = tpu.matmul %72, %73, %cst_36 {dimension_numbers = #tpu.dot_dimension_numbers<[1], [0], [0], [1], [0, 0, 1, 1], [], []>} : vector<16x32xbf16>, vector<32x8xbf16>, vector<16x8xf32> -> vector<16x8xf32>
    %75 = arith.addf %71, %74 : vector<16x8xf32>
    %c0_37 = arith.constant 0 : index
    %c8_38 = arith.constant 8 : index
    %76 = vector.load %arg11[%c0_37, %c8_38] : memref<16x16xf32, #tpu.memory_space<vmem>>, vector<16x8xf32>
    tpu.vector_store %arg11[%c0_37, %c8_38], %75 {strides = array<i32>} : memref<16x16xf32, #tpu.memory_space<vmem>>, vector<16x8xf32>,
    %c0_39 = arith.constant 0 : index
    %c1_40 = arith.constant 1 : index
    %77 = vector.load %arg9[%c0_39, %c1_40] : memref<16x2xf32, #tpu.memory_space<vmem>>, vector<16x1xf32>
    tpu.vector_store %arg9[%c0_39, %c1_40], %57 {strides = array<i32>} : memref<16x2xf32, #tpu.memory_space<vmem>>, vector<16x1xf32>,
    %c0_i32_41 = arith.constant 0 : i32
    %78 = arith.cmpi eq, %arg1, %c0_i32_41 : i32
    %79 = arith.extui %78 : i1 to i32
    %c0_i32_42 = arith.constant 0 : i32
    %80 = arith.cmpi ne, %79, %c0_i32_42 : i32
    scf.if %80 {
      %c0_43 = arith.constant 0 : index
      %c0_44 = arith.constant 0 : index
      %81 = vector.load %arg11[%c0_43, %c0_44] : memref<16x16xf32, #tpu.memory_space<vmem>>, vector<16x8xf32>
      %c0_45 = arith.constant 0 : index
      %c0_46 = arith.constant 0 : index
      %82 = vector.load %arg10[%c0_45, %c0_46] : memref<16x2xf32, #tpu.memory_space<vmem>>, vector<16x1xf32>
      %83 = vector.broadcast %82 : vector<16x1xf32> to vector<16x8xf32>
      %84 = arith.divf %81, %83 : vector<16x8xf32>
      %c0_47 = arith.constant 0 : index
      %c0_48 = arith.constant 0 : index
      %85 = vector.load %arg11[%c0_47, %c0_48] : memref<16x16xf32, #tpu.memory_space<vmem>>, vector<16x8xf32>
      tpu.vector_store %arg11[%c0_47, %c0_48], %84 {strides = array<i32>} : memref<16x16xf32, #tpu.memory_space<vmem>>, vector<16x8xf32>,
      %c0_49 = arith.constant 0 : index
      %c8_50 = arith.constant 8 : index
      %86 = vector.load %arg11[%c0_49, %c8_50] : memref<16x16xf32, #tpu.memory_space<vmem>>, vector<16x8xf32>
      %c0_51 = arith.constant 0 : index
      %c1_52 = arith.constant 1 : index
      %87 = vector.load %arg10[%c0_51, %c1_52] : memref<16x2xf32, #tpu.memory_space<vmem>>, vector<16x1xf32>
      %88 = vector.broadcast %87 : vector<16x1xf32> to vector<16x8xf32>
      %89 = arith.divf %86, %88 : vector<16x8xf32>
      %c0_53 = arith.constant 0 : index
      %c8_54 = arith.constant 8 : index
      %90 = vector.load %arg11[%c0_53, %c8_54] : memref<16x16xf32, #tpu.memory_space<vmem>>, vector<16x8xf32>
      tpu.vector_store %arg11[%c0_53, %c8_54], %89 {strides = array<i32>} : memref<16x16xf32, #tpu.memory_space<vmem>>, vector<16x8xf32>,
      %c0_55 = arith.constant 0 : index
      %c0_56 = arith.constant 0 : index
      %91 = vector.load %arg11[%c0_55, %c0_56] : memref<16x16xf32, #tpu.memory_space<vmem>>, vector<16x16xf32>
      %c0_57 = arith.constant 0 : index
      %c0_58 = arith.constant 0 : index
      %92 = vector.load %arg6[%c0_57, %c0_58] : memref<16x8xf32, #tpu.memory_space<vmem>>, vector<16x8xf32>
      %cst_59 = arith.constant dense<0.000000e+00> : vector<16x8xf32>
      %93 = tpu.matmul %91, %92, %cst_59 {dimension_numbers = #tpu.dot_dimension_numbers<[1], [0], [0], [1], [0, 0, 1, 1], [], []>} : vector<16x16xf32>, vector<16x8xf32>, vector<16x8xf32> -> vector<16x8xf32>
      %c0_60 = arith.constant 0 : index
      %c0_61 = arith.constant 0 : index
      %94 = vector.load %arg7[%c0_60, %c0_61] : memref<1x8xf32, #tpu.memory_space<vmem>>, vector<1x8xf32>
      %95 = vector.broadcast %94 : vector<1x8xf32> to vector<16x8xf32>
      %96 = arith.addf %93, %95 : vector<16x8xf32>
      %c0_62 = arith.constant 0 : index
      %c0_63 = arith.constant 0 : index
      %97 = vector.load %arg8[%c0_62, %c0_63] : memref<16x8xf32, #tpu.memory_space<vmem>>, vector<16x8xf32>
      tpu.vector_store %arg8[%c0_62, %c0_63], %96 {strides = array<i32>} : memref<16x8xf32, #tpu.memory_space<vmem>>, vector<16x8xf32>,
    } else {
    }
    return
  }
  func.func @transform_0(%arg0: i32, %arg1: i32) -> (i32, i32) {
    %c0_i32 = arith.constant 0 : i32
    %c0_i32_0 = arith.constant 0 : i32
    return %arg1, %c0_i32 : i32, i32
  }
  func.func @transform_1(%arg0: i32, %arg1: i32) -> (i32, i32) {
    %c0_i32 = arith.constant 0 : i32
    %c0_i32_0 = arith.constant 0 : i32
    return %c0_i32, %arg1 : i32, i32
  }
  func.func @transform_2(%arg0: i32, %arg1: i32) -> (i32, i32) {
    %c0_i32 = arith.constant 0 : i32
    %c0_i32_0 = arith.constant 0 : i32
    return %arg0, %c0_i32 : i32, i32
  }
  func.func @transform_3(%arg0: i32, %arg1: i32) -> (i32, i32, i32) {
    %c0_i32 = arith.constant 0 : i32
    %c0_i32_0 = arith.constant 0 : i32
    return %c0_i32, %arg0, %arg1 : i32, i32, i32
  }
  func.func @transform_4(%arg0: i32, %arg1: i32) -> (i32, i32) {
    %c0_i32 = arith.constant 0 : i32
    %c0_i32_0 = arith.constant 0 : i32
    %c0_i32_1 = arith.constant 0 : i32
    return %c0_i32, %c0_i32_0 : i32, i32
  }
  func.func @transform_5(%arg0: i32, %arg1: i32) -> (i32, i32) {
    %c0_i32 = arith.constant 0 : i32
    %c0_i32_0 = arith.constant 0 : i32
    %c0_i32_1 = arith.constant 0 : i32
    return %c0_i32, %c0_i32_0 : i32, i32
  }
  func.func @transform_6(%arg0: i32, %arg1: i32) -> (i32, i32) {
    %c0_i32 = arith.constant 0 : i32
    %c0_i32_0 = arith.constant 0 : i32
    return %arg0, %c0_i32 : i32, i32
  }
}

</mosaic_0001>

<llo_original>
// kernel: tpu_custom_call.1
$region0: #{tpu_custom_call.1}
  #allocation0 [shape = 'u32[]', space=smem, size = 0x4, offset = 0x4, fixed_abs, tag = 'smem constant byte address 0x4 - core index']
  #allocation1 [shape = 'u32[144,128]{1,0:T(1,128)}', space=vmem, size = 0x12000, scoped, tag = 'internal scratch']
  #allocation2 [shape = 'f32[16,2]{1,0:T(8,128)}', space=vmem, size = 0x2000, scoped, tag = 'scratch operand']
  #allocation3 [shape = 'f32[16,2]{1,0:T(8,128)}', space=vmem, size = 0x2000, scoped, tag = 'scratch operand']
  #allocation4 [shape = 'f32[16,16]{1,0:T(8,128)}', space=vmem, size = 0x2000, scoped, tag = 'scratch operand']
  %s0 = inlined_call_operand.vmem [shape: bf16[32,16], index: 0, kind: input, shape index: {}]
  %s1 = inlined_call_operand.vmem [shape: f32[2,32], index: 1, kind: input, shape index: {}]
  %s2 = inlined_call_operand.vmem [shape: f32[32,2], index: 2, kind: input, shape index: {}]
  %s3 = inlined_call_operand.vmem [shape: bf16[2,32,32], index: 3, kind: input, shape index: {}]
  %s4 = inlined_call_operand.vmem [shape: f32[16,8], index: 4, kind: input, shape index: {}]
  %s5 = inlined_call_operand.vmem [shape: f32[1,8], index: 5, kind: input, shape index: {}]
  %s6 = inlined_call_operand.vmem [shape: f32[32,8], index: 6, kind: output, shape index: {}]
  %s7 = sld [smem:[#allocation0]]
  $region106: #{tpu_custom_call.1} parent=0
    _
  %s9 = ssub.s32 1, %s7
  %s10 = scalar_select 0, %s9, %s7
  $region1: #{tpu_custom_call.1} parent=0
    #allocation5 [shape = 'u8[16384]{0}', space=vmem, size = 0x4000, scoped, tag = 'input window, operand 3']
    loop: start=0, step=1, limit=4
    $region2: #{tpu_custom_call.1} parent=1 // loop_pre_header
      _
    $region3: #{tpu_custom_call.1} parent=1 // loop_header
      %s12 = sphi 0, %s16
      %p13 = scmp.ge.s32.totalorder %s12, 4
      %s19 = sphi 0, %s31
      %s20 = sphi 0, %s27
      %s21 = sphi 0, %s19
      %s22 = sphi 0, %s20
      %s23 = sphi 0, %s21
      %s24 = sphi 0, %s22
      %s34 = sphi 0, %s36
      %s37 = sphi 0, %s34
      %s38 = sphi 0, %s37
      %s54 = sphi 0, %s38
      %s60 = sphi 0, %s62
      %s63 = sphi 0, %s60
      %s64 = sphi 0, %s63
      %s80 = sphi 0, %s64
      %s86 = sphi 0, %s88
      %s89 = sphi 0, %s86
      %s90 = sphi 0, %s89
      %s106 = sphi 0, %s90
      %s114 = sphi 0, %s116
      %s117 = sphi 0, %s114
      %s118 = sphi 0, %s117
      %s134 = sphi 0, %s118
      %s138 = sphi 0, %s138
      %s140 = sphi 0, %s138
      %s141 = sphi 0, %s140
      %s155 = sphi 0, %s141
      %s159 = sphi 0, %s159
      %s161 = sphi 0, %s159
      %s162 = sphi 0, %s161
      %s176 = sphi 0, %s162
      %s182 = sphi 0, %s184
      %s185 = sphi 0, %s182
      %s186 = sphi 0, %s185
      %s202 = sphi 0, %s186
    $region4: #{tpu_custom_call.1} parent=1 // loop_header_branch
      %15 = sbr.rel (%p13) target = $region8
    $region5: #{tpu_custom_call.1} parent=1 // loop_body
      %s17 = ssub.s32 %s12, 1
      %s18 = ssub.s32 %s12, 2
      %s25 = sadd.s32 1, %s20
      %p26 = scmp.ge.s32.totalorder %s25, 1
      %s27 = scalar_select %p26, 0, %s25
      %s28 = sadd.s32 1, %s19
      %s29 = scalar_select %p26, %s28, %s19
      %p30 = scmp.ge.s32.totalorder %s29, 2
      %s31 = scalar_select %p30, 0, %s29
      %s32 = ssub.s32 %s20, %s27
      %p33 = scmp.eq.s32.totalorder %s32, 0
      %s35 = sadd.s32 %s34, 1
      %s36 = scalar_select %p33, %s34, %s35
      %p39 = pneg %p33
      %p40 = scmp.eq.s32.totalorder %s12, 1
      %p41 = por %p39, %p40
      %p42 = scmp.ne.s32.totalorder %s34, %s37
      %p43 = scmp.eq.s32.totalorder %s12, 0
      %p44 = por %p42, %p43
      %p45 = scmp.ne.s32.totalorder %s34, %s37
      %p46 = scmp.eq.s32.totalorder %s17, 1
      %p47 = por %p45, %p46
      %p48 = scmp.ne.s32.totalorder %s37, %s38
      %p49 = scmp.eq.s32.totalorder %s17, 0
      %p50 = por %p48, %p49
      %p51 = scmp.ne.s32.totalorder %s37, %s38
      %p52 = scmp.eq.s32.totalorder %s18, 1
      %p53 = por %p51, %p52
      %p55 = scmp.ne.s32.totalorder %s38, %s54
      %p56 = scmp.eq.s32.totalorder %s18, 0
      %p57 = por %p55, %p56
      %s58 = ssub.s32 %s20, %s27
      %p59 = scmp.eq.s32.totalorder %s58, 0
      %s61 = sadd.s32 %s60, 1
      %s62 = scalar_select %p59, %s60, %s61
      %p65 = pneg %p59
      %p66 = scmp.eq.s32.totalorder %s12, 1
      %p67 = por %p65, %p66
      %p68 = scmp.ne.s32.totalorder %s60, %s63
      %p69 = scmp.eq.s32.totalorder %s12, 0
      %p70 = por %p68, %p69
      %p71 = scmp.ne.s32.totalorder %s60, %s63
      %p72 = scmp.eq.s32.totalorder %s17, 1
      %p73 = por %p71, %p72
      %p74 = scmp.ne.s32.totalorder %s63, %s64
      %p75 = scmp.eq.s32.totalorder %s17, 0
      %p76 = por %p74, %p75
      %p77 = scmp.ne.s32.totalorder %s63, %s64
      %p78 = scmp.eq.s32.totalorder %s18, 1
      %p79 = por %p77, %p78
      %p81 = scmp.ne.s32.totalorder %s64, %s80
      %p82 = scmp.eq.s32.totalorder %s18, 0
      %p83 = por %p81, %p82
      %s84 = ssub.s32 %s19, %s31
      %p85 = scmp.eq.s32.totalorder %s84, 0
      %s87 = sadd.s32 %s86, 1
      %s88 = scalar_select %p85, %s86, %s87
      %p91 = pneg %p85
      %p92 = scmp.eq.s32.totalorder %s12, 1
      %p93 = por %p91, %p92
      %p94 = scmp.ne.s32.totalorder %s86, %s89
      %p95 = scmp.eq.s32.totalorder %s12, 0
      %p96 = por %p94, %p95
      %p97 = scmp.ne.s32.totalorder %s86, %s89
      %p98 = scmp.eq.s32.totalorder %s17, 1
      %p99 = por %p97, %p98
      %p100 = scmp.ne.s32.totalorder %s89, %s90
      %p101 = scmp.eq.s32.totalorder %s17, 0
      %p102 = por %p100, %p101
      %p103 = scmp.ne.s32.totalorder %s89, %s90
      %p104 = scmp.eq.s32.totalorder %s18, 1
      %p105 = por %p103, %p104
      %p107 = scmp.ne.s32.totalorder %s90, %s106
      %p108 = scmp.eq.s32.totalorder %s18, 0
      %p109 = por %p107, %p108
      %s110 = ssub.s32 %s19, %s31
      %s111 = ssub.s32 %s20, %s27
      %s112 = sor.u32 %s110, %s111
      %p113 = scmp.eq.s32.totalorder %s112, 0
      %s115 = sadd.s32 %s114, 1
      %s116 = scalar_select %p113, %s114, %s115
      %p119 = pneg %p113
      %p120 = scmp.eq.s32.totalorder %s12, 1
      %p121 = por %p119, %p120
      %p122 = scmp.ne.s32.totalorder %s114, %s117
      %p123 = scmp.eq.s32.totalorder %s12, 0
      %p124 = por %p122, %p123
      %p125 = scmp.ne.s32.totalorder %s114, %s117
      %p126 = scmp.eq.s32.totalorder %s17, 1
      %p127 = por %p125, %p126
      %p128 = scmp.ne.s32.totalorder %s117, %s118
      %p129 = scmp.eq.s32.totalorder %s17, 0
      %p130 = por %p128, %p129
      %p131 = scmp.ne.s32.totalorder %s117, %s118
      %p132 = scmp.eq.s32.totalorder %s18, 1
      %p133 = por %p131, %p132
      %p135 = scmp.ne.s32.totalorder %s118, %s134
      %p136 = scmp.eq.s32.totalorder %s18, 0
      %p137 = por %p135, %p136
      %s139 = sadd.s32 %s138, 1
      %p142 = scmp.eq.s32.totalorder %s12, 1
      %p143 = scmp.ne.s32.totalorder %s138, %s140
      %p144 = scmp.eq.s32.totalorder %s12, 0
      %p145 = por %p143, %p144
      %p146 = scmp.ne.s32.totalorder %s138, %s140
      %p147 = scmp.eq.s32.totalorder %s17, 1
      %p148 = por %p146, %p147
      %p149 = scmp.ne.s32.totalorder %s140, %s141
      %p150 = scmp.eq.s32.totalorder %s17, 0
      %p151 = por %p149, %p150
      %p152 = scmp.ne.s32.totalorder %s140, %s141
      %p153 = scmp.eq.s32.totalorder %s18, 1
      %p154 = por %p152, %p153
      %p156 = scmp.ne.s32.totalorder %s141, %s155
      %p157 = scmp.eq.s32.totalorder %s18, 0
      %p158 = por %p156, %p157
      %s160 = sadd.s32 %s159, 1
      %p163 = scmp.eq.s32.totalorder %s12, 1
      %p164 = scmp.ne.s32.totalorder %s159, %s161
      %p165 = scmp.eq.s32.totalorder %s12, 0
      %p166 = por %p164, %p165
      %p167 = scmp.ne.s32.totalorder %s159, %s161
      %p168 = scmp.eq.s32.totalorder %s17, 1
      %p169 = por %p167, %p168
      %p170 = scmp.ne.s32.totalorder %s161, %s162
      %p171 = scmp.eq.s32.totalorder %s17, 0
      %p172 = por %p170, %p171
      %p173 = scmp.ne.s32.totalorder %s161, %s162
      %p174 = scmp.eq.s32.totalorder %s18, 1
      %p175 = por %p173, %p174
      %p177 = scmp.ne.s32.totalorder %s162, %s176
      %p178 = scmp.eq.s32.totalorder %s18, 0
      %p179 = por %p177, %p178
      %s180 = ssub.s32 %s19, %s31
      %p181 = scmp.eq.s32.totalorder %s180, 0
      %s183 = sadd.s32 %s182, 1
      %s184 = scalar_select %p181, %s182, %s183
      %p187 = pneg %p181
      %p188 = scmp.eq.s32.totalorder %s12, 1
      %p189 = por %p187, %p188
      %p190 = scmp.ne.s32.totalorder %s182, %s185
      %p191 = scmp.eq.s32.totalorder %s12, 0
      %p192 = por %p190, %p191
      %p193 = scmp.ne.s32.totalorder %s182, %s185
      %p194 = scmp.eq.s32.totalorder %s17, 1
      %p195 = por %p193, %p194
      %p196 = scmp.ne.s32.totalorder %s185, %s186
      %p197 = scmp.eq.s32.totalorder %s17, 0
      %p198 = por %p196, %p197
      %p199 = scmp.ne.s32.totalorder %s185, %s186
      %p200 = scmp.eq.s32.totalorder %s18, 1
      %p201 = por %p199, %p200
      %p203 = scmp.ne.s32.totalorder %s186, %s202
      %p204 = scmp.eq.s32.totalorder %s18, 0
      %p205 = por %p203, %p204
      %p206 = scmp.le.s32.totalorder 1, %s12
      %p207 = scmp.lt.s32.totalorder %s12, 3
      %p208 = pnand %p206, %p207
      %p209 = pneg %p208
      // Predicated region
      $region9: #{tpu_custom_call.1} parent=5 // pred_check
        _
      $region10: #{tpu_custom_call.1} parent=5 // pred_check_branch
        %211 = sbr.rel (%p208) target = $region12
      $region11: #{tpu_custom_call.1} parent=5 // pred_region
        %s212 = ssub.s32 %s12, 1
        // Predicated region
        $region13: #{tpu_custom_call.1} parent=11 // pred_check
          %p213 = pneg %p50
        $region14: #{tpu_custom_call.1} parent=11 // pred_check_branch
          %215 = sbr.rel (%p213) target = $region16
        $region15: #{tpu_custom_call.1} parent=11 // pred_region
          %s216 = smul.u32 4, %s22
          %p217 = scmp.lt.s32.totalorder %s216, 3
          %s218 = scalar_select %p217, %s216, 3
          %s219 = smul.addr %s218, 4
          %s220 = scalar_lea.vmem %s0, %s219
          %s221 = smul.u32 4, %s22
        $region16: #{tpu_custom_call.1} parent=11 // pred_fallthru
          _
        // Predicated region
        $region17: #{tpu_custom_call.1} parent=11 // pred_check
          %p222 = pneg %p76
        $region18: #{tpu_custom_call.1} parent=11 // pred_check_branch
          %224 = sbr.rel (%p222) target = $region20
        $region19: #{tpu_custom_call.1} parent=11 // pred_region
          %p225 = scmp.lt.s32.totalorder %s22, 0
          %s226 = scalar_select %p225, %s22, 0
          %s227 = smul.addr %s226, 2
          %s228 = scalar_lea.vmem %s1, %s227
        $region20: #{tpu_custom_call.1} parent=11 // pred_fallthru
          _
        // Predicated region
        $region21: #{tpu_custom_call.1} parent=11 // pred_check
          %p229 = pneg %p151
        $region22: #{tpu_custom_call.1} parent=11 // pred_check_branch
          %231 = sbr.rel (%p229) target = $region24
        $region23: #{tpu_custom_call.1} parent=11 // pred_region
          _
        $region24: #{tpu_custom_call.1} parent=11 // pred_fallthru
          _
        // Predicated region
        $region25: #{tpu_custom_call.1} parent=11 // pred_check
          %p232 = pneg %p172
        $region26: #{tpu_custom_call.1} parent=11 // pred_check_branch
          %234 = sbr.rel (%p232) target = $region28
        $region27: #{tpu_custom_call.1} parent=11 // pred_region
          _
        $region28: #{tpu_custom_call.1} parent=11 // pred_fallthru
          _
      $region12: #{tpu_custom_call.1} parent=5 // pred_fallthru
        _
      %p235 = scmp.lt.s32.totalorder %s12, 2
      // Predicated region
      $region29: #{tpu_custom_call.1} parent=5 // pred_check
        %p236 = pneg %p235
      $region30: #{tpu_custom_call.1} parent=5 // pred_check_branch
        %238 = sbr.rel (%p236) target = $region32
      $region31: #{tpu_custom_call.1} parent=5 // pred_region
        // Predicated region
        $region33: #{tpu_custom_call.1} parent=31 // pred_check
          %p239 = pneg %p96
        $region34: #{tpu_custom_call.1} parent=31 // pred_check_branch
          %241 = sbr.rel (%p239) target = $region36
        $region35: #{tpu_custom_call.1} parent=31 // pred_region
          %s242 = smul.u32 2, %s19
          %p243 = scmp.lt.s32.totalorder %s242, 3
          %s244 = scalar_select %p243, %s242, 3
          %s245 = smul.addr %s244, 8
          %s246 = scalar_lea.vmem %s2, %s245
          %s247 = smul.u32 2, %s19
        $region36: #{tpu_custom_call.1} parent=31 // pred_fallthru
          _
        // Predicated region
        $region37: #{tpu_custom_call.1} parent=31 // pred_check
          %p248 = pneg %p124
        $region38: #{tpu_custom_call.1} parent=31 // pred_check_branch
          %250 = sbr.rel (%p248) target = $region40
        $region39: #{tpu_custom_call.1} parent=31 // pred_region
          %s251 = sand.u32 %s114, 1
          %s252 = sand.u32 %s114, 1
          %s253 = smul.addr %s252, 16
          %s254 = scalar_lea.vmem [#allocation5], %s253
          %s255 = smul.u32 2, %s19
          %s256 = sadd.s32 %s20, %s255
          %s257 = smul.addr %s256, 4
          %s258 = scalar_lea.vmem %s3, %s257
          // Predicated region
          $region41: #{tpu_custom_call.1} parent=39 // pred_check
            _
          $region42: #{tpu_custom_call.1} parent=39 // pred_check_branch
            %260 = sbr.rel (0) target = $region44
          $region43: #{tpu_custom_call.1} parent=39 // pred_region
            // Predicated region
            $region45: #{tpu_custom_call.1} parent=43 // pred_check
              _
            $region46: #{tpu_custom_call.1} parent=43 // pred_check_branch
              %262 = sbr.rel target = $region48
            $region47: #{tpu_custom_call.1} parent=43 // pred_region
              // Predicated region
              $region60: #{tpu_custom_call.1} parent=47 // pred_check
                _
              $region61: #{tpu_custom_call.1} parent=47 // pred_check_branch
                %284 = sbr.rel (0) target = $region63
              $region62: #{tpu_custom_call.1} parent=47 // pred_region
                loop: start=0, step=1, limit=1
                $region64: #{tpu_custom_call.1} parent=62 // loop_pre_header
                  _
                $region65: #{tpu_custom_call.1} parent=62 // loop_header
                  %s286 = sphi 0, %s290
                  %p287 = scmp.ge.s32.totalorder %s286, 1
                  %s291 = sphi %s258, %s258
                  %s292 = sphi %s254, %s254
                $region66: #{tpu_custom_call.1} parent=62 // loop_header_branch
                  %289 = sbr.rel (%p287) target = $region70
                $region67: #{tpu_custom_call.1} parent=62 // loop_body
                  _
                $region68: #{tpu_custom_call.1} parent=62 // loop_footer
                  %s290 = sadd.s32 1, %s286
                $region69: #{tpu_custom_call.1} parent=62 // loop_footer_branch
                  %285 = sbr.rel target = $region65
                $region70: #{tpu_custom_call.1} parent=62 // loop_exit
                  _
                %s294 = ssub.s32 16, 1
                loop: start=0, step=1, limit=1
                $region71: #{tpu_custom_call.1} parent=62 // loop_pre_header
                  _
                $region72: #{tpu_custom_call.1} parent=62 // loop_header
                  %s296 = sphi 0, %s300
                  %p297 = scmp.ge.s32.totalorder %s296, 1
                  %s301 = sphi %s258, %s258
                  %s302 = sphi %s254, %s254
                $region73: #{tpu_custom_call.1} parent=62 // loop_header_branch
                  %299 = sbr.rel (%p297) target = $region77
                $region74: #{tpu_custom_call.1} parent=62 // loop_body
                  %v303 = vld [vmem:[%s301] sm:%s294]
                  %304 = vst [vmem:[%s302] sm:%s294] %v303
                  %v305 = vld [vmem:[%s301 + $0x4] sm:%s294]
                  %306 = vst [vmem:[%s302 + $0x4] sm:%s294] %v305
                  %v307 = vld [vmem:[%s301 + $0x10] sm:%s294]
                  %308 = vst [vmem:[%s302 + $0x8] sm:%s294] %v307
                  %v309 = vld [vmem:[%s301 + $0x14] sm:%s294]
                  %310 = vst [vmem:[%s302 + $0xc] sm:%s294] %v309
                $region75: #{tpu_custom_call.1} parent=62 // loop_footer
                  %s300 = sadd.s32 1, %s296
                $region76: #{tpu_custom_call.1} parent=62 // loop_footer_branch
                  %295 = sbr.rel target = $region72
                $region77: #{tpu_custom_call.1} parent=62 // loop_exit
                  _
              $region63: #{tpu_custom_call.1} parent=47 // pred_fallthru
                _
            $region48: #{tpu_custom_call.1} parent=43 // pred_fallthru
              _
            // Predicated region
            $region49: #{tpu_custom_call.1} parent=43 // pred_check
              _
            $region50: #{tpu_custom_call.1} parent=43 // pred_check_branch
              %264 = sbr.rel (0) target = $region52
            $region51: #{tpu_custom_call.1} parent=43 // pred_region
              %s266 = ssub.s32 16, 1
              loop: start=0, step=1, limit=1
              $region53: #{tpu_custom_call.1} parent=51 // loop_pre_header
                _
              $region54: #{tpu_custom_call.1} parent=51 // loop_header
                %s268 = sphi 0, %s272
                %p269 = scmp.ge.s32.totalorder %s268, 1
                %s273 = sphi %s258, %s258
                %s274 = sphi %s254, %s254
              $region55: #{tpu_custom_call.1} parent=51 // loop_header_branch
                %271 = sbr.rel (%p269) target = $region59
              $region56: #{tpu_custom_call.1} parent=51 // loop_body
                %v275 = vld [vmem:[%s273] sm:%s266]
                %276 = vst [vmem:[%s274] sm:%s266] %v275
                %v277 = vld [vmem:[%s273 + $0x4] sm:%s266]
                %278 = vst [vmem:[%s274 + $0x4] sm:%s266] %v277
                %v279 = vld [vmem:[%s273 + $0x10] sm:%s266]
                %280 = vst [vmem:[%s274 + $0x8] sm:%s266] %v279
                %v281 = vld [vmem:[%s273 + $0x14] sm:%s266]
                %282 = vst [vmem:[%s274 + $0xc] sm:%s266] %v281
              $region57: #{tpu_custom_call.1} parent=51 // loop_footer
                %s272 = sadd.s32 1, %s268
              $region58: #{tpu_custom_call.1} parent=51 // loop_footer_branch
                %267 = sbr.rel target = $region54
              $region59: #{tpu_custom_call.1} parent=51 // loop_exit
                _
            $region52: #{tpu_custom_call.1} parent=43 // pred_fallthru
              _
          $region44: #{tpu_custom_call.1} parent=39 // pred_fallthru
            _
          %311 = vnop
        $region40: #{tpu_custom_call.1} parent=31 // pred_fallthru
          _
      $region32: #{tpu_custom_call.1} parent=5 // pred_fallthru
        _
      %p312 = scmp.le.s32.totalorder 1, %s12
      %p313 = scmp.lt.s32.totalorder %s12, 3
      %p314 = pnand %p312, %p313
      %p315 = pneg %p314
      // Predicated region
      $region78: #{tpu_custom_call.1} parent=5 // pred_check
        _
      $region79: #{tpu_custom_call.1} parent=5 // pred_check_branch
        %317 = sbr.rel (%p314) target = $region81
      $region80: #{tpu_custom_call.1} parent=5 // pred_region
        %s318 = ssub.s32 %s12, 1
        %s319 = sand.u32 %s117, 1
        %s320 = sand.u32 %s117, 1
        %s321 = smul.addr %s320, 16
        %s322 = scalar_lea.vmem [#allocation5], %s321
        // Predicated region
        $region82: #{tpu_custom_call.1} parent=80 // pred_check
          %p323 = pneg %p130
        $region83: #{tpu_custom_call.1} parent=80 // pred_check_branch
          %325 = sbr.rel (%p323) target = $region85
        $region84: #{tpu_custom_call.1} parent=80 // pred_region
          _
        $region85: #{tpu_custom_call.1} parent=80 // pred_fallthru
          _
        %s326 = smul.u32 4, %s22
        %p327 = scmp.lt.s32.totalorder %s326, 3
        %s328 = scalar_select %p327, %s326, 3
        %s329 = smul.addr %s328, 4
        %s330 = scalar_lea.vmem %s0, %s329
        %p331 = pneg %p50
        %p332 = pneg %p47
        %p333 = scmp.lt.s32.totalorder %s22, 0
        %s334 = scalar_select %p333, %s22, 0
        %s335 = smul.addr %s334, 2
        %s336 = scalar_lea.vmem %s1, %s335
        %p337 = pneg %p76
        %p338 = pneg %p73
        %s339 = smul.u32 2, %s21
        %p340 = scmp.lt.s32.totalorder %s339, 3
        %s341 = scalar_select %p340, %s339, 3
        %s342 = smul.addr %s341, 8
        %s343 = scalar_lea.vmem %s2, %s342
        %p344 = pneg %p102
        %p345 = pneg %p99
        %s346 = sand.u32 %s117, 1
        %s347 = sand.u32 %s117, 1
        %s348 = smul.addr %s347, 16
        %s349 = scalar_lea.vmem [#allocation5], %s348
        %p350 = pneg %p130
        %p351 = pneg %p127
        %p352 = pneg %p151
        %p353 = pneg %p148
        %p354 = pneg %p172
        %p355 = pneg %p169
        %p356 = pneg %p198
        %p357 = pneg %p195
        %s358 = smul.u32 2, %s21
        %p359 = scmp.lt.s32.totalorder %s358, 3
        %s360 = scalar_select %p359, %s358, 3
        %s361 = smul.addr %s360, 8
        %s362 = scalar_lea.vmem %s6, %s361
        %s363 = smul.u32 4, %s22
        %p364 = scmp.lt.s32.totalorder %s363, 3
        %s365 = scalar_select %p364, %s363, 3
        %s366 = smul.addr %s365, 4
        %s367 = scalar_lea.vmem %s0, %s366
        %s368 = smul.u32 4, %s22
        %p369 = scmp.lt.s32.totalorder %s22, 0
        %s370 = scalar_select %p369, %s22, 0
        %s371 = smul.addr %s370, 2
        %s372 = scalar_lea.vmem %s1, %s371
        %s373 = smul.u32 2, %s21
        %p374 = scmp.lt.s32.totalorder %s373, 3
        %s375 = scalar_select %p374, %s373, 3
        %s376 = smul.addr %s375, 8
        %s377 = scalar_lea.vmem %s2, %s376
        %s378 = smul.u32 2, %s21
        %s379 = smul.u32 2, %s21
        %s380 = smul.u32 2, %s21
        %p381 = scmp.lt.s32.totalorder %s380, 3
        %s382 = scalar_select %p381, %s380, 3
        %s383 = smul.addr %s382, 8
        %s384 = scalar_lea.vmem %s6, %s383
        %s385 = smul.u32 2, %s21
        %p387 = scmp.eq.s32.totalorder %s22, 0
        // Predicated region
        $region86: #{tpu_custom_call.1} parent=80 // pred_check
          %p388 = pneg %p387
        $region87: #{tpu_custom_call.1} parent=80 // pred_check_branch
          %390 = sbr.rel (%p388) target = $region89
        $region88: #{tpu_custom_call.1} parent=80 // pred_region
          %vm391 = vcmask 15360
          %392 = vst.msk [vmem:[#allocation2] sm:$0xff] %vm391, -inf
          %393 = vst.msk [vmem:[#allocation2 + $0x8] sm:$0xff] %vm391, -inf
          %394 = vst.msk [vmem:[#allocation3] sm:$0xff] %vm391, 0.0
          %395 = vst.msk [vmem:[#allocation3 + $0x8] sm:$0xff] %vm391, 0.0
          %vm396 = vcmask 130048
          %397 = vst.msk [vmem:[#allocation4] sm:$0xff] %vm396, 0.0
          %398 = vst.msk [vmem:[#allocation4 + $0x8] sm:$0xff] %vm396, 0.0
        $region89: #{tpu_custom_call.1} parent=80 // pred_fallthru
          _
        %v399 = vld [vmem:[%s377] sm:$0xff]
        %v400 = vld [vmem:[%s377 + $0x8] sm:$0xff]
        %v401 = vld [vmem:[%s372] sm:$0x3]
        %v402 = vld [vmem:[%s367] sm:$0xf]
        %v403 = vld [vmem:[%s367 + $0x4] sm:$0xf]
        %v404 = vld [vmem:[%s367 + $0x8] sm:$0xf]
        %v405 = vld [vmem:[%s367 + $0xc] sm:$0xf]
        %v406 = vld [vmem:[%s322] sm:$0xf]
        %v407 = vld [vmem:[%s322 + $0x4] sm:$0xf]
        %v408 = vunpack.c.l.bf16 %v406
        %v409 = vunpack.c.l.bf16 %v407
        %411 = vset.pattern.permute.xlu0 0
        %412 = vperm.xlu0 %411, %v399
        %v413 = vpop.permute.xlu0 %412
        %416 = vset.pattern.permute.xlu0 0
        %417 = vperm.xlu0 %416, %v400
        %v418 = vpop.permute.xlu0 %417
        %v420 = vadd.f32 %v408, %v413
        %v421 = vadd.f32 %v409, %v418
        %v422 = vlaneseq
        %v423 = vshrl.u32 %v422, 7
        %v424 = vsub.s32 0, %v423
        %v425 = vrot.slane %v401, %v424
        %v426 = vadd.f32 %v420, %v425
        %v427 = vadd.f32 %v421, %v425
        %v428 = vmul.f32 %v426, 0.2
        %v429 = vmul.f32 %v427, 0.2
        %v430 = vmax.f32 %v426, %v428
        %v431 = vmax.f32 %v427, %v429
        %v432 = vld [vmem:[#allocation2] sm:$0xff]
        %v433 = vld [vmem:[#allocation2 + $0x8] sm:$0xff]
        %vm434 = vcmask 261120
        %v435 = vsel %vm434, %v430, -inf
        %436 = vmax.xlane.f32.xlu0 %v435
        %v437 = vpop.xlane.xlu0 %436
        %v438 = vsel %vm434, %v431, -inf
        %439 = vmax.xlane.f32.xlu0 %v438
        %v440 = vpop.xlane.xlu0 %439
        %v441 = vmax.f32 %v432, %v437
        %v442 = vmax.f32 %v433, %v440
        %v443 = vsub.f32 %v432, %v441
        %v444 = vsub.f32 %v433, %v442
        %v445 = vmul.f32 %v443, 1.442695
        %v446 = vpow.pop %v445
        %v447 = vmul.f32 %v444, 1.442695
        %v448 = vpow.pop %v447
        %450 = vset.pattern.permute.xlu0 0
        %451 = vperm.xlu0 %450, %v441
        %v452 = vpop.permute.xlu0 %451
        %455 = vset.pattern.permute.xlu0 0
        %456 = vperm.xlu0 %455, %v442
        %v457 = vpop.permute.xlu0 %456
        %v459 = vsub.f32 %v430, %v452
        %v460 = vsub.f32 %v431, %v457
        %v461 = vmul.f32 %v459, 1.442695
        %v462 = vpow.pop %v461
        %v463 = vmul.f32 %v460, 1.442695
        %v464 = vpow.pop %v463
        %v465 = vld [vmem:[#allocation3] sm:$0xff]
        %v466 = vld [vmem:[#allocation3 + $0x8] sm:$0xff]
        %v467 = vmul.f32 %v446, %v465
        %v468 = vmul.f32 %v448, %v466
        %v469 = vsel %vm434, %v462, 0.0
        %470 = vadd.xlane.f32.xlu0 %v469
        %v471 = vpop.xlane.xlu0 %470
        %v472 = vsel %vm434, %v464, 0.0
        %473 = vadd.xlane.f32.xlu0 %v472
        %v474 = vpop.xlane.xlu0 %473
        %v475 = vadd.f32 %v467, %v471
        %v476 = vadd.f32 %v468, %v474
        %vm477 = vcmask 7168
        %478 = vst.msk [vmem:[#allocation3] sm:$0xff] %vm477, %v475
        %479 = vst.msk [vmem:[#allocation3 + $0x8] sm:$0xff] %vm477, %v476
        %v480 = vld [vmem:[#allocation4] sm:$0xff]
        %v481 = vld [vmem:[#allocation4 + $0x8] sm:$0xff]
        %483 = vset.pattern.permute.xlu0 0
        %484 = vperm.xlu0 %483, %v446
        %v485 = vpop.permute.xlu0 %484
        %488 = vset.pattern.permute.xlu0 0
        %489 = vperm.xlu0 %488, %v448
        %v490 = vpop.permute.xlu0 %489
        %v492 = vmul.f32 %v485, %v480
        %v493 = vmul.f32 %v490, %v481
        %v494 = vpack.c.bf16 %v464, %v462
        %v499 = vunpack.c.l.b16 %v402
        %v500 = vunpack.c.l.b16 %v403
        %v501 = vunpack.c.l.b16 %v404
        %v502 = vunpack.c.l.b16 %v405
        %v503 = vpack.c.b16 %v500, %v499
        %v504 = vpack.c.b16 %v502, %v501
        %v508 = vsel %vm434, %v494, 0
        %510 = vmatprep.subr.bf16.mxu0 0
        %511 = vmatpush1.bf16.msra.mxu0 0
        %512 = vmatprep.subr.bf16.mxu0 0
        %513 = vmatpush1.bf16.msra.mxu0 0
        %514 = vmatprep.subr.bf16.mxu0 0
        %515 = vmatpush1.bf16.msra.mxu0 0
        %516 = vmatprep.subr.bf16.mxu0 0
        %517 = vmatpush1.bf16.msra.mxu0 0
        %518 = vmatprep.subr.bf16.mxu0 0
        %519 = vmatpush1.bf16.msra.mxu0 0
        %520 = vmatprep.subr.bf16.mxu0 0
        %521 = vmatpush1.bf16.msra.mxu0 0
        %522 = vmatprep.subr.bf16.mxu0 0
        %523 = vmatpush1.bf16.msra.mxu0 %v504
        %524 = vmatprep.subr.bf16.mxu0 0
        %525 = vmatpush1.bf16.msra.mxu0 %v503
        %526 = vmatprep.subr.bf16.mxu0 0
        %527 = vmatpush2.bf16.msra.mxu0 0
        %528 = vmatprep.subr.bf16.mxu0 0
        %529 = vmatpush2.bf16.msra.mxu0 0
        %530 = vmatprep.subr.bf16.mxu0 0
        %531 = vmatpush2.bf16.msra.mxu0 0
        %532 = vmatprep.subr.bf16.mxu0 0
        %533 = vmatpush2.bf16.msra.mxu0 0
        %534 = vmatprep.subr.bf16.mxu0 0
        %535 = vmatpush2.bf16.msra.mxu0 0
        %536 = vmatprep.subr.bf16.mxu0 0
        %537 = vmatpush2.bf16.msra.mxu0 0
        %538 = vmatprep.subr.bf16.mxu0 0
        %539 = vmatpush2.bf16.msra.mxu0 0
        %540 = vmatprep.subr.bf16.mxu0 0
        %541 = vmatpush2.bf16.msra.mxu0 0
        %542 = vmatprep.mubr.bf16.mxu0 0
        %543 = vmatmul.mubr.bf16.gmra.mxu0 %v508
        %v544 = vpop.f32.mrf.mxu0
        %v545 = vadd.f32 0.0, %v544
        %v546 = vpop.f32.mrf.mxu0
        %v547 = vpop.f32.mrf.mxu0
        %v548 = vadd.f32 0.0, %v547
        %v549 = vpop.f32.mrf.mxu0
        %550 = vdwg.mxu0
        %v551 = vadd.f32 %v492, %v545
        %v552 = vadd.f32 %v493, %v548
        %vm553 = vcmask 64512
        %554 = vst.msk [vmem:[#allocation4] sm:$0xff] %vm553, %v551
        %555 = vst.msk [vmem:[#allocation4 + $0x8] sm:$0xff] %vm553, %v552
        %556 = vst.msk [vmem:[#allocation2] sm:$0xff] %vm477, %v441
        %557 = vst.msk [vmem:[#allocation2 + $0x8] sm:$0xff] %vm477, %v442
        %s558 = scalar_lea.vmem %s322, 8 [#allocation5]
        %v559 = vld [vmem:[%s558] sm:$0xf]
        %v560 = vld [vmem:[%s558 + $0x4] sm:$0xf]
        %v561 = vunpack.c.l.bf16 %v559
        %v562 = vunpack.c.l.bf16 %v560
        %563 = vset.pattern.permute.xlu0 1
        %564 = vperm.xlu0 %563, %v399
        %v565 = vpop.permute.xlu0 %564
        %567 = vset.pattern.permute.xlu0 1
        %568 = vperm.xlu0 %567, %v400
        %v569 = vpop.permute.xlu0 %568
        %v571 = vadd.f32 %v561, %v565
        %v572 = vadd.f32 %v562, %v569
        %v573 = vlaneseq
        %v574 = vshrl.u32 %v573, 7
        %v575 = vsub.s32 1, %v574
        %v576 = vrot.slane %v401, %v575
        %v577 = vadd.f32 %v571, %v576
        %v578 = vadd.f32 %v572, %v576
        %v579 = vmul.f32 %v577, 0.2
        %v580 = vmul.f32 %v578, 0.2
        %v581 = vmax.f32 %v577, %v579
        %v582 = vmax.f32 %v578, %v580
        %v583 = vld [vmem:[#allocation2] sm:$0xff]
        %v584 = vld [vmem:[#allocation2 + $0x8] sm:$0xff]
        %v585 = vsel %vm434, %v581, -inf
        %586 = vmax.xlane.f32.xlu0 %v585
        %v587 = vpop.xlane.xlu0 %586
        %v588 = vsel %vm434, %v582, -inf
        %589 = vmax.xlane.f32.xlu0 %v588
        %v590 = vpop.xlane.xlu0 %589
        %v591 = vmax.f32 %v583, %v587
        %v592 = vmax.f32 %v584, %v590
        %v593 = vsub.f32 %v583, %v591
        %v594 = vsub.f32 %v584, %v592
        %v595 = vmul.f32 %v593, 1.442695
        %v596 = vpow.pop %v595
        %v597 = vmul.f32 %v594, 1.442695
        %v598 = vpow.pop %v597
        %600 = vset.pattern.permute.xlu0 1
        %601 = vperm.xlu0 %600, %v591
        %v602 = vpop.permute.xlu0 %601
        %605 = vset.pattern.permute.xlu0 1
        %606 = vperm.xlu0 %605, %v592
        %v607 = vpop.permute.xlu0 %606
        %v609 = vsub.f32 %v581, %v602
        %v610 = vsub.f32 %v582, %v607
        %v611 = vmul.f32 %v609, 1.442695
        %v612 = vpow.pop %v611
        %v613 = vmul.f32 %v610, 1.442695
        %v614 = vpow.pop %v613
        %v615 = vld [vmem:[#allocation3] sm:$0xff]
        %v616 = vld [vmem:[#allocation3 + $0x8] sm:$0xff]
        %v617 = vmul.f32 %v596, %v615
        %v618 = vmul.f32 %v598, %v616
        %v619 = vsel %vm434, %v612, 0.0
        %620 = vadd.xlane.f32.xlu0 %v619
        %v621 = vpop.xlane.xlu0 %620
        %v622 = vsel %vm434, %v614, 0.0
        %623 = vadd.xlane.f32.xlu0 %v622
        %v624 = vpop.xlane.xlu0 %623
        %v625 = vadd.f32 %v617, %v621
        %v626 = vadd.f32 %v618, %v624
        %vm627 = vcmask 15368
        %628 = vst.msk [vmem:[#allocation3] sm:$0xff] %vm627, %v625
        %629 = vst.msk [vmem:[#allocation3 + $0x8] sm:$0xff] %vm627, %v626
        %v630 = vld [vmem:[#allocation4] sm:$0xff]
        %v631 = vld [vmem:[#allocation4 + $0x8] sm:$0xff]
        %633 = vset.pattern.permute.xlu0 1
        %634 = vperm.xlu0 %633, %v596
        %v635 = vpop.permute.xlu0 %634
        %638 = vset.pattern.permute.xlu0 1
        %639 = vperm.xlu0 %638, %v598
        %v640 = vpop.permute.xlu0 %639
        %v642 = vmul.f32 %v635, %v630
        %v643 = vmul.f32 %v640, %v631
        %v644 = vpack.c.bf16 %v614, %v612
        %645 = vrot.lane.b32.xlu0 %v503, 120
        %v646 = vpop.permute.xlu0 %645
        %647 = vrot.lane.b32.xlu0 %v504, 120
        %v648 = vpop.permute.xlu0 %647
        %v652 = vsel %vm434, %v644, 0
        %654 = vmatprep.subr.bf16.mxu0 0
        %655 = vmatpush1.bf16.msra.mxu0 0
        %656 = vmatprep.subr.bf16.mxu0 0
        %657 = vmatpush1.bf16.msra.mxu0 0
        %658 = vmatprep.subr.bf16.mxu0 0
        %659 = vmatpush1.bf16.msra.mxu0 0
        %660 = vmatprep.subr.bf16.mxu0 0
        %661 = vmatpush1.bf16.msra.mxu0 0
        %662 = vmatprep.subr.bf16.mxu0 0
        %663 = vmatpush1.bf16.msra.mxu0 0
        %664 = vmatprep.subr.bf16.mxu0 0
        %665 = vmatpush1.bf16.msra.mxu0 0
        %666 = vmatprep.subr.bf16.mxu0 0
        %667 = vmatpush1.bf16.msra.mxu0 %v648
        %668 = vmatprep.subr.bf16.mxu0 0
        %669 = vmatpush1.bf16.msra.mxu0 %v646
        %670 = vmatprep.subr.bf16.mxu0 0
        %671 = vmatpush2.bf16.msra.mxu0 0
        %672 = vmatprep.subr.bf16.mxu0 0
        %673 = vmatpush2.bf16.msra.mxu0 0
        %674 = vmatprep.subr.bf16.mxu0 0
        %675 = vmatpush2.bf16.msra.mxu0 0
        %676 = vmatprep.subr.bf16.mxu0 0
        %677 = vmatpush2.bf16.msra.mxu0 0
        %678 = vmatprep.subr.bf16.mxu0 0
        %679 = vmatpush2.bf16.msra.mxu0 0
        %680 = vmatprep.subr.bf16.mxu0 0
        %681 = vmatpush2.bf16.msra.mxu0 0
        %682 = vmatprep.subr.bf16.mxu0 0
        %683 = vmatpush2.bf16.msra.mxu0 0
        %684 = vmatprep.subr.bf16.mxu0 0
        %685 = vmatpush2.bf16.msra.mxu0 0
        %686 = vmatprep.mubr.bf16.mxu0 0
        %687 = vmatmul.mubr.bf16.gmra.mxu0 %v652
        %v688 = vpop.f32.mrf.mxu0
        %v689 = vadd.f32 0.0, %v688
        %v690 = vpop.f32.mrf.mxu0
        %v691 = vpop.f32.mrf.mxu0
        %v692 = vadd.f32 0.0, %v691
        %v693 = vpop.f32.mrf.mxu0
        %694 = vdwg.mxu0
        %697 = vrot.lane.b32.xlu0 %v689, 8
        %v698 = vpop.permute.xlu0 %697
        %699 = vrot.lane.b32.xlu0 %v692, 8
        %v700 = vpop.permute.xlu0 %699
        %v703 = vadd.f32 %v642, %v698
        %v704 = vadd.f32 %v643, %v700
        %vm705 = vcmask 130112
        %706 = vst.msk [vmem:[#allocation4] sm:$0xff] %vm705, %v703
        %707 = vst.msk [vmem:[#allocation4 + $0x8] sm:$0xff] %vm705, %v704
        %708 = vst.msk [vmem:[#allocation2] sm:$0xff] %vm627, %v591
        %709 = vst.msk [vmem:[#allocation2 + $0x8] sm:$0xff] %vm627, %v592
        // Predicated region
        $region90: #{tpu_custom_call.1} parent=80 // pred_check
          %p710 = pneg %p387
        $region91: #{tpu_custom_call.1} parent=80 // pred_check_branch
          %712 = sbr.rel (%p710) target = $region93
        $region92: #{tpu_custom_call.1} parent=80 // pred_region
          %v713 = vld [vmem:[#allocation4] sm:$0xff]
          %v714 = vld [vmem:[#allocation4 + $0x8] sm:$0xff]
          %v715 = vld [vmem:[#allocation3] sm:$0xff]
          %v716 = vld [vmem:[#allocation3 + $0x8] sm:$0xff]
          %718 = vset.pattern.permute.xlu0 0
          %719 = vperm.xlu0 %718, %v715
          %v720 = vpop.permute.xlu0 %719
          %723 = vset.pattern.permute.xlu0 0
          %724 = vperm.xlu0 %723, %v716
          %v725 = vpop.permute.xlu0 %724
          %v727 = vrcp.pop %v720
          %v728 = vmul.f32 %v713, %v727
          %v729 = vrcp.pop %v725
          %v730 = vmul.f32 %v714, %v729
          %731 = vst.msk [vmem:[#allocation4] sm:$0xff] %vm553, %v728
          %732 = vst.msk [vmem:[#allocation4 + $0x8] sm:$0xff] %vm553, %v730
          %v733 = vld [vmem:[#allocation4] sm:$0xff]
          %v734 = vld [vmem:[#allocation4 + $0x8] sm:$0xff]
          %v735 = vld [vmem:[#allocation3] sm:$0xff]
          %v736 = vld [vmem:[#allocation3 + $0x8] sm:$0xff]
          %738 = vset.pattern.permute.xlu0 1
          %739 = vperm.xlu0 %738, %v735
          %v740 = vpop.permute.xlu0 %739
          %743 = vset.pattern.permute.xlu0 1
          %744 = vperm.xlu0 %743, %v736
          %v745 = vpop.permute.xlu0 %744
          %v747 = vrcp.pop %v740
          %v748 = vmul.f32 %v733, %v747
          %v749 = vrcp.pop %v745
          %v750 = vmul.f32 %v734, %v749
          %751 = vst.msk [vmem:[#allocation4] sm:$0xff] %vm705, %v748
          %752 = vst.msk [vmem:[#allocation4 + $0x8] sm:$0xff] %vm705, %v750
          %v753 = vld [vmem:[#allocation4] sm:$0xff]
          %v754 = vld [vmem:[#allocation4 + $0x8] sm:$0xff]
          %v755 = vld [vmem:[%s4] sm:$0xff]
          %v756 = vld [vmem:[%s4 + $0x8] sm:$0xff]
          %v757 = vld [vmem:[%s5] sm:$0x1]
          %v759 = vlaneseq
          %v760 = vshrl.u32 %v759, 7
          %v761 = vsub.s32 0, %v760
          %v762 = vrot.slane %v757, %v761
          %vm764 = vcmask 130048
          %v766 = vsel %vm764, %v753, 0
          %v769 = vsel %vm764, %v754, 0
          %771 = vmatprep.subr.mxu0 0.0
          %772 = vmatpush1.msra.mxu0 0.0
          %773 = vmatprep.subr.mxu0 0.0
          %774 = vmatpush1.msra.mxu0 0.0
          %775 = vmatprep.subr.mxu0 0.0
          %776 = vmatpush1.msra.mxu0 0.0
          %777 = vmatprep.subr.mxu0 0.0
          %778 = vmatpush1.msra.mxu0 0.0
          %779 = vmatprep.subr.mxu0 0.0
          %780 = vmatpush1.msra.mxu0 0.0
          %781 = vmatprep.subr.mxu0 0.0
          %782 = vmatpush1.msra.mxu0 0.0
          %783 = vmatprep.subr.mxu0 0.0
          %784 = vmatpush1.msra.mxu0 0.0
          %785 = vmatprep.subr.mxu0 0.0
          %786 = vmatpush1.msra.mxu0 0.0
          %787 = vmatprep.subr.mxu0 0.0
          %788 = vmatpush1.msra.mxu0 0.0
          %789 = vmatprep.subr.mxu0 0.0
          %790 = vmatpush1.msra.mxu0 0.0
          %791 = vmatprep.subr.mxu0 0.0
          %792 = vmatpush1.msra.mxu0 0.0
          %793 = vmatprep.subr.mxu0 0.0
          %794 = vmatpush1.msra.mxu0 0.0
          %795 = vmatprep.subr.mxu0 0.0
          %796 = vmatpush1.msra.mxu0 0.0
          %797 = vmatprep.subr.mxu0 0.0
          %798 = vmatpush1.msra.mxu0 0.0
          %799 = vmatprep.subr.mxu0 0.0
          %800 = vmatpush1.msra.mxu0 %v756
          %801 = vmatprep.subr.mxu0 0.0
          %802 = vmatpush1.msra.mxu0 %v755
          %803 = vmatprep.subr.mxu0 0.0
          %804 = vmatpush2.msra.mxu0 0.0
          %805 = vmatprep.subr.mxu0 0.0
          %806 = vmatpush2.msra.mxu0 0.0
          %807 = vmatprep.subr.mxu0 0.0
          %808 = vmatpush2.msra.mxu0 0.0
          %809 = vmatprep.subr.mxu0 0.0
          %810 = vmatpush2.msra.mxu0 0.0
          %811 = vmatprep.subr.mxu0 0.0
          %812 = vmatpush2.msra.mxu0 0.0
          %813 = vmatprep.subr.mxu0 0.0
          %814 = vmatpush2.msra.mxu0 0.0
          %815 = vmatprep.subr.mxu0 0.0
          %816 = vmatpush2.msra.mxu0 0.0
          %817 = vmatprep.subr.mxu0 0.0
          %818 = vmatpush2.msra.mxu0 0.0
          %819 = vmatprep.subr.mxu0 0.0
          %820 = vmatpush2.msra.mxu0 0.0
          %821 = vmatprep.subr.mxu0 0.0
          %822 = vmatpush2.msra.mxu0 0.0
          %823 = vmatprep.subr.mxu0 0.0
          %824 = vmatpush2.msra.mxu0 0.0
          %825 = vmatprep.subr.mxu0 0.0
          %826 = vmatpush2.msra.mxu0 0.0
          %827 = vmatprep.subr.mxu0 0.0
          %828 = vmatpush2.msra.mxu0 0.0
          %829 = vmatprep.subr.mxu0 0.0
          %830 = vmatpush2.msra.mxu0 0.0
          %831 = vmatprep.subr.mxu0 0.0
          %832 = vmatpush2.msra.mxu0 0.0
          %833 = vmatprep.subr.mxu0 0.0
          %834 = vmatpush2.msra.mxu0 0.0
          %835 = vmatprep.mubr.f32.mxu0 0.0
          %836 = vmatmul.mubr.f32.gmra.mxu0 %v766
          %v837 = vpop.f32.mrf.mxu0
          %v838 = vadd.f32 %v762, %v837
          %v839 = vpop.f32.mrf.mxu0
          %840 = vmatprep.mubr.f32.mxu0 0.0
          %841 = vmatmul.mubr.f32.gmra.mxu0 %v769
          %v842 = vpop.f32.mrf.mxu0
          %v843 = vadd.f32 %v762, %v842
          %v844 = vpop.f32.mrf.mxu0
          %845 = vdwg.mxu0
          %846 = vst.msk [vmem:[%s384] sm:$0xff] %vm553, %v838
          %847 = vst.msk [vmem:[%s384 + $0x8] sm:$0xff] %vm553, %v843
        $region93: #{tpu_custom_call.1} parent=80 // pred_fallthru
          _
        %s848 = smul.u32 2, %s21
        %p849 = scmp.lt.s32.totalorder %s848, 3
        %s850 = scalar_select %p849, %s848, 3
        %s851 = smul.addr %s850, 8
        %s852 = scalar_lea.vmem %s6, %s851
        // Predicated region
        $region94: #{tpu_custom_call.1} parent=80 // pred_check
          %p853 = pneg %p195
        $region95: #{tpu_custom_call.1} parent=80 // pred_check_branch
          %855 = sbr.rel (%p853) target = $region97
        $region96: #{tpu_custom_call.1} parent=80 // pred_region
          %s856 = smul.u32 2, %s21
        $region97: #{tpu_custom_call.1} parent=80 // pred_fallthru
          _
      $region81: #{tpu_custom_call.1} parent=5 // pred_fallthru
        _
      %p857 = scmp.le.s32.totalorder 2, %s12
      // Predicated region
      $region98: #{tpu_custom_call.1} parent=5 // pred_check
        %p858 = pneg %p857
      $region99: #{tpu_custom_call.1} parent=5 // pred_check_branch
        %860 = sbr.rel (%p858) target = $region101
      $region100: #{tpu_custom_call.1} parent=5 // pred_region
        %s861 = ssub.s32 %s12, 2
        // Predicated region
        $region102: #{tpu_custom_call.1} parent=100 // pred_check
          %p862 = pneg %p201
        $region103: #{tpu_custom_call.1} parent=100 // pred_check_branch
          %864 = sbr.rel (%p862) target = $region105
        $region104: #{tpu_custom_call.1} parent=100 // pred_region
          %s865 = smul.u32 2, %s23
          %p866 = scmp.lt.s32.totalorder %s865, 3
          %s867 = scalar_select %p866, %s865, 3
          %s868 = smul.addr %s867, 8
          %s869 = scalar_lea.vmem %s6, %s868
        $region105: #{tpu_custom_call.1} parent=100 // pred_fallthru
          _
      $region101: #{tpu_custom_call.1} parent=5 // pred_fallthru
        _
    $region6: #{tpu_custom_call.1} parent=1 // loop_footer
      %s16 = sadd.s32 1, %s12
    $region7: #{tpu_custom_call.1} parent=1 // loop_footer_branch
      %11 = sbr.rel target = $region3
    $region8: #{tpu_custom_call.1} parent=1 // loop_exit
      _

</llo_original>
